<compile_context>
chip_gen: v7x
topology: tpu7x:2x2x1
jax: 0.10.0
libtpu: 0.0.40
codegen_flags: <defaults>
</compile_context>

<pallas_src>
import jax
import jax.numpy as jnp
from jax import lax
from jax.experimental import pallas as pl
from jax.experimental.pallas import tpu as pltpu

H1, H2 = 64, 32          # true hidden widths (PyTorch module)
H1P, H2P = 128, 128      # lane-padded hidden widths used on-chip


def _round_up(n, m):
    return (n + m - 1) // m * m


# --------------------------------------------------------------------------
# Kernel
# --------------------------------------------------------------------------
def mlp_kernel(x_ref, w1_ref, b1_ref, w2_ref, b2_ref, w3_ref, b3_ref, o_ref):
    # f32 -> bf16 cast happens here on the VPU instead of as a separate XLA op
    # in the wrapper (which would read+write the whole x array in HBM again).
    x = x_ref[...].astype(jnp.bfloat16)                              # (TB, D)

    # fc1 + ReLU : MXU matmul, f32 accumulation, f32 elementwise.
    h1 = jnp.dot(x, w1_ref[...], preferred_element_type=jnp.float32) + b1_ref[...]
    h1 = jnp.maximum(h1, 0.0)                                        # (TB, 128)

    # fc2 + ReLU
    h2 = jnp.dot(h1.astype(jnp.bfloat16), w2_ref[...],
                 preferred_element_type=jnp.float32) + b2_ref[...]
    h2 = jnp.maximum(h2, 0.0)                                        # (TB, 128)

    # fc3 (single output unit): (1, H2P) . (TB, H2P)^T -> (1, TB).
    # This keeps the output row lane-dense (full-vreg, contiguous writeback)
    # instead of a (TB, 1) column of masked partial stores.  Kept in f32.
    y = lax.dot_general(w3_ref[...], h2, (((1,), (1,)), ((), ())),
                        preferred_element_type=jnp.float32) + b3_ref[...]
    o_ref[...] = y.reshape(1, 1, -1)                                 # (1,1,TB)


# --------------------------------------------------------------------------
# Parameter preparation (pad hidden dims to 128 lanes, bf16 matmul weights)
# --------------------------------------------------------------------------
def prepare_params(params):
    """Weights stored pre-transposed (in, out); y = x @ W + b == PyTorch x @ W^T + b."""
    w1, b1, w2, b2, w3, b3 = params
    d = w1.shape[0]
    w1p = jnp.zeros((d, H1P), jnp.float32).at[:, :H1].set(w1).astype(jnp.bfloat16)
    b1p = jnp.zeros((1, H1P), jnp.float32).at[:, :H1].set(b1)
    w2p = jnp.zeros((H1P, H2P), jnp.float32).at[:H1, :H2].set(w2).astype(jnp.bfloat16)
    b2p = jnp.zeros((1, H2P), jnp.float32).at[:, :H2].set(b2)
    w3p = jnp.zeros((1, H2P), jnp.float32).at[:, :H2].set(w3[:, 0])      # f32 row
    b3p = b3.reshape(1, 1).astype(jnp.float32)
    return (w1p, b1p, w2p, b2p, w3p, b3p)


# --------------------------------------------------------------------------
# Generation-aware tiling
# --------------------------------------------------------------------------
def _vmem_capacity_bytes():
    # Conservative fallback = v7x per-TensorCore VMEM (smallest generation).
    cap = 64 * 1024 * 1024
    try:
        info = pltpu.get_tpu_info()
        cap = int(getattr(info, "vmem_capacity_bytes", cap))
    except Exception:
        pass
    return cap


def _vmem_need_bytes(tb, d):
    return (2 * tb * d * 4          # x tile, double-buffered, f32
            + 2 * d * H1P * 2       # w1 bf16 (double-buffered despite const map)
            + 2 * H1P * H2P * 2     # w2 bf16
            + 2 * tb * 4            # output row, double-buffered
            + 4 * tb * H2P * 4      # h1/h2 f32 (+ bf16 copies) temporaries
            + (1 << 20))            # misc slack


def _pick_tile(batch_padded, d, vmem_bytes):
    # v5e/v6e (128 MiB VMEM): up to 2048 rows; v7x (64 MiB): up to 1024.
    max_tb = 2048 if vmem_bytes >= 96 * 1024 * 1024 else 1024
    budget = (vmem_bytes * 3) // 5
    tb = 8
    for cand in (2048, 1024, 512, 256, 128, 64, 32, 16, 8):
        if cand <= max_tb and _vmem_need_bytes(cand, d) <= budget:
            tb = cand
            break
    tb = min(tb, batch_padded)
    # Guarantee >= 2 grid steps when possible so v7x megacore ("parallel")
    # can shard the batch across both TensorCores (harmless on v5e/v6e).
    if batch_padded // tb < 2 and batch_padded >= 16:
        tb = _round_up(-(-batch_padded // 2), 8)
    return tb


# --------------------------------------------------------------------------
# Wrapper
# --------------------------------------------------------------------------
def net_forward(x, params):
    """x: (B, input_size) f32.  params: unpadded f32 (in,out)/(1,out) tensors."""
    B, D = x.shape
    w1p, b1p, w2p, b2p, w3p, b3p = prepare_params(params)

    vmem_bytes = _vmem_capacity_bytes()
    pb = _round_up(B, 8)
    tb = _pick_tile(pb, D, vmem_bytes)
    pb = _round_up(pb, tb)

    # Pad only when the batch is ragged w.r.t. the tile; x stays f32 (the
    # bf16 cast happens inside the kernel).  Padded rows are sliced off below.
    x_p = x if pb == B else jnp.pad(x, ((0, pb - B), (0, 0)))

    n_tiles = pb // tb
    grid = (n_tiles,)

    flops = 2 * pb * (D * H1P + H1P * H2P + H2P)
    bytes_accessed = (pb * D * 4 + w1p.size * 2 + w2p.size * 2
                      + (b1p.size + b2p.size + w3p.size + b3p.size) * 4
                      + pb * 4)
    vmem_limit = int(min((vmem_bytes * 3) // 4,
                         max(32 * 1024 * 1024, 2 * _vmem_need_bytes(tb, D))))

    out = pl.pallas_call(
        mlp_kernel,
        out_shape=jax.ShapeDtypeStruct((n_tiles, 1, tb), jnp.float32),
        grid=grid,
        in_specs=[
            pl.BlockSpec((tb, D), lambda i: (i, 0)),        # x tile streams per step
            pl.BlockSpec(w1p.shape, lambda i: (0, 0)),      # weights stay resident
            pl.BlockSpec(b1p.shape, lambda i: (0, 0)),
            pl.BlockSpec(w2p.shape, lambda i: (0, 0)),
            pl.BlockSpec(b2p.shape, lambda i: (0, 0)),
            pl.BlockSpec(w3p.shape, lambda i: (0, 0)),
            pl.BlockSpec(b3p.shape, lambda i: (0, 0)),
        ],
        out_specs=pl.BlockSpec((1, 1, tb), lambda i: (i, 0, 0)),   # lane-dense row
        compiler_params=pltpu.CompilerParams(
            dimension_semantics=("parallel",),
            vmem_limit_bytes=vmem_limit),
        cost_estimate=pl.CostEstimate(
            flops=flops, transcendentals=0, bytes_accessed=bytes_accessed),
    )(x_p, w1p, b1p, w2p, b2p, w3p, b3p)

    # (n_tiles, 1, tb) rows are batch-major in order -> (pb, 1), drop padding.
    return out.reshape(pb, 1)[:B]


# --------------------------------------------------------------------------
# Init + references
# --------------------------------------------------------------------------
def init_params(key, input_size):
    # PyTorch nn.Linear-style init; weights stored transposed: (in, out).
    k1, k2, k3 = jax.random.split(key, 3)

    def linear(k, fan_in, fan_out):
        bound = 1.0 / jnp.sqrt(fan_in)
        kw, kb = jax.random.split(k)
        w = jax.random.uniform(kw, (fan_in, fan_out), jnp.float32, -bound, bound)
        b = jax.random.uniform(kb, (1, fan_out), jnp.float32, -bound, bound)
        return w, b

    w1, b1 = linear(k1, input_size, H1)
    w2, b2 = linear(k2, H1, H2)
    w3, b3 = linear(k3, H2, 1)
    return (w1, b1, w2, b2, w3, b3)


def reference_forward_f32(x, params):
    w1, b1, w2, b2, w3, b3 = params
    h1 = jnp.maximum(x @ w1 + b1, 0.0)
    h2 = jnp.maximum(h1 @ w2 + b2, 0.0)
    return h2 @ w3 + b3


def reference_forward_bf16(x, params):
    # Mirrors the kernel's numerics: bf16 matmul inputs, f32 accumulation,
    # f32 bias/ReLU/fc3.
    w1, b1, w2, b2, w3, b3 = params
    xb = x.astype(jnp.bfloat16)
    h1 = jnp.maximum(
        jnp.dot(xb, w1.astype(jnp.bfloat16), preferred_element_type=jnp.float32) + b1, 0.0)
    h2 = jnp.maximum(
        jnp.dot(h1.astype(jnp.bfloat16), w2.astype(jnp.bfloat16),
                preferred_element_type=jnp.float32) + b2, 0.0)
    return h2 @ w3 + b3


if __name__ == "__main__":
    key = jax.random.PRNGKey(0)
    kx, kp = jax.random.split(key)

    batch = 8
    input_size = 16  # number of (scaled) input features
    x = jax.random.normal(kx, (batch, input_size), dtype=jnp.float32)

    params = init_params(kp, input_size)

    out = net_forward(x, params)
    out = jax.block_until_ready(out)

    ref_bf16 = reference_forward_bf16(x, params)
    ref_f32 = reference_forward_f32(x, params)

    assert out.shape == (batch, 1)
    assert jnp.allclose(out, ref_bf16, atol=1e-3, rtol=1e-3)   # same numerics
    assert jnp.allclose(out, ref_f32, atol=5e-2, rtol=5e-2)    # f32 semantics

    print("KERNEL_OK")
</pallas_src>

<mosaic_0001>
module attributes {stable_mosaic.version = 11 : i64} {
  func.func @mlp_kernel(%arg0: i32, %arg1: memref<8x16xf32, #tpu.memory_space<vmem>>, %arg2: memref<16x128xbf16, #tpu.memory_space<vmem>>, %arg3: memref<1x128xf32, #tpu.memory_space<vmem>>, %arg4: memref<128x128xbf16, #tpu.memory_space<vmem>>, %arg5: memref<1x128xf32, #tpu.memory_space<vmem>>, %arg6: memref<1x128xf32, #tpu.memory_space<vmem>>, %arg7: memref<1x1xf32, #tpu.memory_space<vmem>>, %arg8: memref<1x1x8xf32, #tpu.memory_space<vmem>>) attributes {dimension_semantics = [#tpu.dimension_semantics<parallel>], iteration_bounds = array<i64: 1>, scalar_prefetch = 0 : i64, scratch_operands = 0 : i64, tpu.core_type = #tpu.core_type<tc>, window_params = [{transform_indices = @transform_0, window_bounds = array<i64: 8, 16>}, {pipeline_mode = #tpu.pipeline_mode<synchronous>, transform_indices = @transform_1, window_bounds = array<i64: 16, 128>}, {pipeline_mode = #tpu.pipeline_mode<synchronous>, transform_indices = @transform_2, window_bounds = array<i64: 1, 128>}, {pipeline_mode = #tpu.pipeline_mode<synchronous>, transform_indices = @transform_3, window_bounds = array<i64: 128, 128>}, {pipeline_mode = #tpu.pipeline_mode<synchronous>, transform_indices = @transform_4, window_bounds = array<i64: 1, 128>}, {pipeline_mode = #tpu.pipeline_mode<synchronous>, transform_indices = @transform_5, window_bounds = array<i64: 1, 128>}, {pipeline_mode = #tpu.pipeline_mode<synchronous>, transform_indices = @transform_6, window_bounds = array<i64: 1, 1>}, {transform_indices = @transform_7, window_bounds = array<i64: 1, 1, 8>}]} {
    %c0 = arith.constant 0 : index
    %c0_0 = arith.constant 0 : index
    %0 = vector.load %arg1[%c0, %c0_0] : memref<8x16xf32, #tpu.memory_space<vmem>>, vector<8x16xf32>
    %1 = arith.truncf %0 : vector<8x16xf32> to vector<8x16xbf16>
    %c0_1 = arith.constant 0 : index
    %c0_2 = arith.constant 0 : index
    %2 = vector.load %arg2[%c0_1, %c0_2] : memref<16x128xbf16, #tpu.memory_space<vmem>>, vector<16x128xbf16>
    %cst = arith.constant dense<0.000000e+00> : vector<8x128xf32>
    %3 = tpu.matmul %1, %2, %cst {dimension_numbers = #tpu.dot_dimension_numbers<[1], [0], [0], [1], [0, 0, 1, 1], [], []>} : vector<8x16xbf16>, vector<16x128xbf16>, vector<8x128xf32> -> vector<8x128xf32>
    %c0_3 = arith.constant 0 : index
    %c0_4 = arith.constant 0 : index
    %4 = vector.load %arg3[%c0_3, %c0_4] : memref<1x128xf32, #tpu.memory_space<vmem>>, vector<1x128xf32>
    %5 = vector.broadcast %4 : vector<1x128xf32> to vector<8x128xf32>
    %6 = arith.addf %3, %5 : vector<8x128xf32>
    %cst_5 = arith.constant 0.000000e+00 : f32
    %7 = vector.broadcast %cst_5 : f32 to vector<8x128xf32>
    %8 = arith.maximumf %6, %7 : vector<8x128xf32>
    %9 = arith.truncf %8 : vector<8x128xf32> to vector<8x128xbf16>
    %c0_6 = arith.constant 0 : index
    %c0_7 = arith.constant 0 : index
    %10 = vector.load %arg4[%c0_6, %c0_7] : memref<128x128xbf16, #tpu.memory_space<vmem>>, vector<128x128xbf16>
    %cst_8 = arith.constant dense<0.000000e+00> : vector<8x128xf32>
    %11 = tpu.matmul %9, %10, %cst_8 {dimension_numbers = #tpu.dot_dimension_numbers<[1], [0], [0], [1], [0, 0, 1, 1], [], []>} : vector<8x128xbf16>, vector<128x128xbf16>, vector<8x128xf32> -> vector<8x128xf32>
    %c0_9 = arith.constant 0 : index
    %c0_10 = arith.constant 0 : index
    %12 = vector.load %arg5[%c0_9, %c0_10] : memref<1x128xf32, #tpu.memory_space<vmem>>, vector<1x128xf32>
    %13 = vector.broadcast %12 : vector<1x128xf32> to vector<8x128xf32>
    %14 = arith.addf %11, %13 : vector<8x128xf32>
    %cst_11 = arith.constant 0.000000e+00 : f32
    %15 = vector.broadcast %cst_11 : f32 to vector<8x128xf32>
    %16 = arith.maximumf %14, %15 : vector<8x128xf32>
    %c0_12 = arith.constant 0 : index
    %c0_13 = arith.constant 0 : index
    %17 = vector.load %arg6[%c0_12, %c0_13] : memref<1x128xf32, #tpu.memory_space<vmem>>, vector<1x128xf32>
    %cst_14 = arith.constant dense<0.000000e+00> : vector<1x8xf32>
    %18 = tpu.matmul %17, %16, %cst_14 {dimension_numbers = #tpu.dot_dimension_numbers<[1], [1], [0], [0], [0, 0, 1, 0], [], []>} : vector<1x128xf32>, vector<8x128xf32>, vector<1x8xf32> -> vector<1x8xf32>
    %c0_15 = arith.constant 0 : index
    %c0_16 = arith.constant 0 : index
    %19 = vector.load %arg7[%c0_15, %c0_16] : memref<1x1xf32, #tpu.memory_space<vmem>>, vector<1x1xf32>
    %20 = vector.broadcast %19 : vector<1x1xf32> to vector<1x8xf32>
    %21 = arith.addf %18, %20 : vector<1x8xf32>
    %22 = vector.shape_cast %21 : vector<1x8xf32> to vector<1x1x8xf32>
    %c0_17 = arith.constant 0 : index
    %c0_18 = arith.constant 0 : index
    %c0_19 = arith.constant 0 : index
    %23 = vector.load %arg8[%c0_17, %c0_18, %c0_19] : memref<1x1x8xf32, #tpu.memory_space<vmem>>, vector<1x1x8xf32>
    tpu.vector_store %arg8[%c0_17, %c0_18, %c0_19], %22 {strides = array<i32>} : memref<1x1x8xf32, #tpu.memory_space<vmem>>, vector<1x1x8xf32>,
    return
  }
  func.func @transform_0(%arg0: i32) -> (i32, i32) {
    %c0_i32 = arith.constant 0 : i32
    %c0_i32_0 = arith.constant 0 : i32
    return %arg0, %c0_i32 : i32, i32
  }
  func.func @transform_1(%arg0: i32) -> (i32, i32) {
    %c0_i32 = arith.constant 0 : i32
    %c0_i32_0 = arith.constant 0 : i32
    %c0_i32_1 = arith.constant 0 : i32
    return %c0_i32, %c0_i32_0 : i32, i32
  }
  func.func @transform_2(%arg0: i32) -> (i32, i32) {
    %c0_i32 = arith.constant 0 : i32
    %c0_i32_0 = arith.constant 0 : i32
    %c0_i32_1 = arith.constant 0 : i32
    return %c0_i32, %c0_i32_0 : i32, i32
  }
  func.func @transform_3(%arg0: i32) -> (i32, i32) {
    %c0_i32 = arith.constant 0 : i32
    %c0_i32_0 = arith.constant 0 : i32
    %c0_i32_1 = arith.constant 0 : i32
    return %c0_i32, %c0_i32_0 : i32, i32
  }
  func.func @transform_4(%arg0: i32) -> (i32, i32) {
    %c0_i32 = arith.constant 0 : i32
    %c0_i32_0 = arith.constant 0 : i32
    %c0_i32_1 = arith.constant 0 : i32
    return %c0_i32, %c0_i32_0 : i32, i32
  }
  func.func @transform_5(%arg0: i32) -> (i32, i32) {
    %c0_i32 = arith.constant 0 : i32
    %c0_i32_0 = arith.constant 0 : i32
    %c0_i32_1 = arith.constant 0 : i32
    return %c0_i32, %c0_i32_0 : i32, i32
  }
  func.func @transform_6(%arg0: i32) -> (i32, i32) {
    %c0_i32 = arith.constant 0 : i32
    %c0_i32_0 = arith.constant 0 : i32
    %c0_i32_1 = arith.constant 0 : i32
    return %c0_i32, %c0_i32_0 : i32, i32
  }
  func.func @transform_7(%arg0: i32) -> (i32, i32, i32) {
    %c0_i32 = arith.constant 0 : i32
    %c0_i32_0 = arith.constant 0 : i32
    %c0_i32_1 = arith.constant 0 : i32
    return %arg0, %c0_i32, %c0_i32_0 : i32, i32, i32
  }
}

</mosaic_0001>

<llo_original>
// kernel: tpu_custom_call.1
$region0: #{tpu_custom_call.1}
  #allocation0 [shape = 'u32[]', space=smem, size = 0x4, offset = 0x4, fixed_abs, tag = 'smem constant byte address 0x4 - core index']
  #allocation1 [shape = 'u32[144,128]{1,0:T(1,128)}', space=vmem, size = 0x12000, scoped, tag = 'internal scratch']
  #allocation2 [shape = 'f32[1,1]{1,0:T(1,128)S(1)}', space=vmem, size = 0x200, scoped, tag = 'scoped memory for tpu_custom_call.1']
  %s0 = inlined_call_operand.hbm [shape: f32[8,16], index: 0, kind: input, shape index: {}]
  %s1 = inlined_call_operand.hbm [shape: bf16[16,128], index: 1, kind: input, shape index: {}]
  %s2 = inlined_call_operand.vmem [shape: f32[1,128], index: 2, kind: input, shape index: {}]
  %s3 = inlined_call_operand.hbm [shape: bf16[128,128], index: 3, kind: input, shape index: {}]
  %s4 = inlined_call_operand.vmem [shape: f32[1,128], index: 4, kind: input, shape index: {}]
  %s5 = inlined_call_operand.vmem [shape: f32[1,128], index: 5, kind: input, shape index: {}]
  %s6 = inlined_call_operand.<no memory space> [shape: f32[1,1], index: 6, kind: input, shape index: {}]
  %s7 = inlined_call_operand.hbm [shape: f32[1,1,8], index: 7, kind: output, shape index: {}]
  %s8 = sld [smem:[#allocation0]]
  $region50: #{tpu_custom_call.1} parent=0
    _
  %s10 = ssub.s32 1, %s8
  %s11 = scalar_select 0, %s10, %s8
  %v12 = vstv %s6
  %13 = vst [vmem:[#allocation2] sm:$0x1] %v12
  $region1: #{tpu_custom_call.1} parent=0
    #allocation3 [shape = 'u8[4096]{0}', space=vmem, size = 0x1000, scoped, tag = 'input window, operand 0, single buffered']
    #allocation4 [shape = 's32[1]{0}', space=sflag, size = 0x4, scoped, tag = 'scoped memory for tpu_custom_call.1']
    #allocation5 [shape = 's32[1]{0}', space=sflag, size = 0x4, scoped, tag = 'scoped memory for tpu_custom_call.1']
    #allocation6 [shape = 'u8[4096]{0}', space=vmem, size = 0x1000, scoped, tag = 'input window, operand 1, single buffered']
    #allocation7 [shape = 's32[1]{0}', space=sflag, size = 0x4, scoped, tag = 'scoped memory for tpu_custom_call.1']
    #allocation8 [shape = 'u8[32768]{0}', space=vmem, size = 0x8000, scoped, tag = 'input window, operand 3, single buffered']
    #allocation9 [shape = 'u8[512]{0}', space=vmem, size = 0x400, scoped, tag = 'output window, operand 0, single buffered']
    %14 = vsyncpa [#allocation4], 0
    %15 = vsyncpa [#allocation7], 0
    %16 = vsyncpa [#allocation5], 0
    // Predicated region
    $region2: #{tpu_custom_call.1} parent=1 // pred_check
      _
    $region3: #{tpu_custom_call.1} parent=1 // pred_check_branch
      %18 = sbr.rel (0) target = $region5
    $region4: #{tpu_custom_call.1} parent=1 // pred_region
      %s20 = ssub.s32 128, 128
      %21 = vsyncadd [#allocation4], %s20
      %s23 = sshll.u32 [#allocation3], 4
      %s24 = int_to_ptr.vmem [resolvable:$true] %s23
      %26 = dma.hbm_to_vmem [thread:$0]  %s0, 128, %s24, [#allocation4]
    $region5: #{tpu_custom_call.1} parent=1 // pred_fallthru
      _
    // Predicated region
    $region6: #{tpu_custom_call.1} parent=1 // pred_check
      _
    $region7: #{tpu_custom_call.1} parent=1 // pred_check_branch
      %28 = sbr.rel (0) target = $region9
    $region8: #{tpu_custom_call.1} parent=1 // pred_region
      %s30 = ssub.s32 128, 128
      %31 = vsyncadd [#allocation7], %s30
      %s32 = sshll.u32 [#allocation6], 4
      %s33 = int_to_ptr.vmem [resolvable:$true] %s32
      %38 = dma.hbm_to_vmem [thread:$0]  %s1, 128, %s33, [#allocation7], 64, 64, 4
    $region9: #{tpu_custom_call.1} parent=1 // pred_fallthru
      _
    // Predicated region
    $region10: #{tpu_custom_call.1} parent=1 // pred_check
      _
    $region11: #{tpu_custom_call.1} parent=1 // pred_check_branch
      %40 = sbr.rel (0) target = $region13
    $region12: #{tpu_custom_call.1} parent=1 // pred_region
      _
    $region13: #{tpu_custom_call.1} parent=1 // pred_fallthru
      _
    // Predicated region
    $region14: #{tpu_custom_call.1} parent=1 // pred_check
      _
    $region15: #{tpu_custom_call.1} parent=1 // pred_check_branch
      %42 = sbr.rel (0) target = $region17
    $region16: #{tpu_custom_call.1} parent=1 // pred_region
      %s44 = ssub.s32 1024, 1024
      %45 = vsyncadd [#allocation7], %s44
      %s46 = sshll.u32 [#allocation8], 4
      %s47 = int_to_ptr.vmem [resolvable:$true] %s46
      %52 = dma.hbm_to_vmem [thread:$0]  %s3, 1024, %s47, [#allocation7], 64, 64, 4
    $region17: #{tpu_custom_call.1} parent=1 // pred_fallthru
      _
    // Predicated region
    $region18: #{tpu_custom_call.1} parent=1 // pred_check
      _
    $region19: #{tpu_custom_call.1} parent=1 // pred_check_branch
      %54 = sbr.rel (0) target = $region21
    $region20: #{tpu_custom_call.1} parent=1 // pred_region
      _
    $region21: #{tpu_custom_call.1} parent=1 // pred_fallthru
      _
    // Predicated region
    $region22: #{tpu_custom_call.1} parent=1 // pred_check
      _
    $region23: #{tpu_custom_call.1} parent=1 // pred_check_branch
      %56 = sbr.rel (0) target = $region25
    $region24: #{tpu_custom_call.1} parent=1 // pred_region
      _
    $region25: #{tpu_custom_call.1} parent=1 // pred_fallthru
      _
    // Predicated region
    $region26: #{tpu_custom_call.1} parent=1 // pred_check
      _
    $region27: #{tpu_custom_call.1} parent=1 // pred_check_branch
      %58 = sbr.rel (0) target = $region29
    $region28: #{tpu_custom_call.1} parent=1 // pred_region
      _
    $region29: #{tpu_custom_call.1} parent=1 // pred_fallthru
      _
    // Predicated region
    $region30: #{tpu_custom_call.1} parent=1 // pred_check
      _
    $region31: #{tpu_custom_call.1} parent=1 // pred_check_branch
      %60 = sbr.rel (0) target = $region33
    $region32: #{tpu_custom_call.1} parent=1 // pred_region
      %61 = dma.done [#allocation4], 128
    $region33: #{tpu_custom_call.1} parent=1 // pred_fallthru
      _
    // Predicated region
    $region34: #{tpu_custom_call.1} parent=1 // pred_check
      _
    $region35: #{tpu_custom_call.1} parent=1 // pred_check_branch
      %63 = sbr.rel (0) target = $region37
    $region36: #{tpu_custom_call.1} parent=1 // pred_region
      %64 = dma.done [#allocation7], 128
    $region37: #{tpu_custom_call.1} parent=1 // pred_fallthru
      _
    // Predicated region
    $region38: #{tpu_custom_call.1} parent=1 // pred_check
      _
    $region39: #{tpu_custom_call.1} parent=1 // pred_check_branch
      %66 = sbr.rel (0) target = $region41
    $region40: #{tpu_custom_call.1} parent=1 // pred_region
      %67 = dma.done [#allocation7], 1024
    $region41: #{tpu_custom_call.1} parent=1 // pred_fallthru
      _
    %v69 = vld [vmem:[#allocation3] sm:$0xff]
    %v70 = vpack.c.bf16 %v69, %v69
    %v71 = vld [vmem:[#allocation6] sm:$0xf]
    %v72 = vld [vmem:[#allocation6 + $0x4] sm:$0xf]
    %v73 = vld [vmem:[%s2] sm:$0x1]
    %v75 = vlaneseq
    %v76 = vshrl.u32 %v75, 7
    %v77 = vsub.s32 0, %v76
    %v78 = vrot.slane %v73, %v77
    %v82 = vunpack.c.l.b16 %v71
    %v83 = vunpack.c.l.b16 %v72
    %v84 = vpack.c.b16 %v83, %v82
    %vm86 = vcmask 130048
    %v88 = vsel %vm86, %v70, 0
    %90 = vmatprep.subr.bf16.mxu0 0
    %91 = vmatpush1.bf16.msra.mxu0 %v84
    %92 = vmatprep.subr.bf16.mxu0 0
    %93 = vmatpush1.bf16.msra.mxu0 0
    %94 = vmatprep.subr.bf16.mxu0 0
    %95 = vmatpush1.bf16.msra.mxu0 0
    %96 = vmatprep.subr.bf16.mxu0 0
    %97 = vmatpush1.bf16.msra.mxu0 0
    %98 = vmatprep.subr.bf16.mxu0 0
    %99 = vmatpush1.bf16.msra.mxu0 0
    %100 = vmatprep.subr.bf16.mxu0 0
    %101 = vmatpush1.bf16.msra.mxu0 0
    %102 = vmatprep.subr.bf16.mxu0 0
    %103 = vmatpush1.bf16.msra.mxu0 0
    %104 = vmatprep.subr.bf16.mxu0 0
    %105 = vmatpush1.bf16.msra.mxu0 0
    %106 = vmatprep.subr.bf16.mxu0 0
    %107 = vmatpush1.bf16.msra.mxu0 0
    %108 = vmatprep.subr.bf16.mxu0 0
    %109 = vmatpush1.bf16.msra.mxu0 0
    %110 = vmatprep.subr.bf16.mxu0 0
    %111 = vmatpush1.bf16.msra.mxu0 0
    %112 = vmatprep.subr.bf16.mxu0 0
    %113 = vmatpush1.bf16.msra.mxu0 0
    %114 = vmatprep.subr.bf16.mxu0 0
    %115 = vmatpush1.bf16.msra.mxu0 0
    %116 = vmatprep.subr.bf16.mxu0 0
    %117 = vmatpush1.bf16.msra.mxu0 0
    %118 = vmatprep.subr.bf16.mxu0 0
    %119 = vmatpush1.bf16.msra.mxu0 0
    %120 = vmatprep.subr.bf16.mxu0 0
    %121 = vmatpush1.bf16.msra.mxu0 0
    %122 = vmatprep.mubr.bf16.mxu0 0
    %123 = vmatmul.mubr.bf16.gmra.mrb[0].mxu0 %v88
    %v124 = vpop.f32.mrb[0].mxu0
    %v125 = vadd.f32 %v78, %v124
    %v126 = vpop.f32.mrb[0].mxu0
    %v127 = vpop.f32.mrb[0].mxu0
    %v128 = vpop.f32.mrb[0].mxu0
    %129 = vdwg.mxu0
    %v130 = vmax.f32 %v125, 0.0
    %v131 = vpack.c.bf16 %v130, %v130
    %v132 = vld [vmem:[#allocation8] sm:$0xf]
    %v133 = vld [vmem:[#allocation8 + $0x4] sm:$0xf]
    %v134 = vld [vmem:[#allocation8 + $0x8] sm:$0xf]
    %v135 = vld [vmem:[#allocation8 + $0xc] sm:$0xf]
    %v136 = vld [vmem:[#allocation8 + $0x10] sm:$0xf]
    %v137 = vld [vmem:[#allocation8 + $0x14] sm:$0xf]
    %v138 = vld [vmem:[#allocation8 + $0x18] sm:$0xf]
    %v139 = vld [vmem:[#allocation8 + $0x1c] sm:$0xf]
    %v140 = vld [vmem:[#allocation8 + $0x20] sm:$0xf]
    %v141 = vld [vmem:[#allocation8 + $0x24] sm:$0xf]
    %v142 = vld [vmem:[#allocation8 + $0x28] sm:$0xf]
    %v143 = vld [vmem:[#allocation8 + $0x2c] sm:$0xf]
    %v144 = vld [vmem:[#allocation8 + $0x30] sm:$0xf]
    %v145 = vld [vmem:[#allocation8 + $0x34] sm:$0xf]
    %v146 = vld [vmem:[#allocation8 + $0x38] sm:$0xf]
    %v147 = vld [vmem:[#allocation8 + $0x3c] sm:$0xf]
    %v148 = vld [vmem:[%s4] sm:$0x1]
    %v150 = vlaneseq
    %v151 = vshrl.u32 %v150, 7
    %v152 = vsub.s32 0, %v151
    %v153 = vrot.slane %v148, %v152
    %v171 = vunpack.c.l.b16 %v132
    %v172 = vunpack.c.l.b16 %v133
    %v173 = vunpack.c.l.b16 %v134
    %v174 = vunpack.c.l.b16 %v135
    %v175 = vunpack.c.l.b16 %v136
    %v176 = vunpack.c.l.b16 %v137
    %v177 = vunpack.c.l.b16 %v138
    %v178 = vunpack.c.l.b16 %v139
    %v179 = vunpack.c.l.b16 %v140
    %v180 = vunpack.c.l.b16 %v141
    %v181 = vunpack.c.l.b16 %v142
    %v182 = vunpack.c.l.b16 %v143
    %v183 = vunpack.c.l.b16 %v144
    %v184 = vunpack.c.l.b16 %v145
    %v185 = vunpack.c.l.b16 %v146
    %v186 = vunpack.c.l.b16 %v147
    %v187 = vpack.c.b16 %v172, %v171
    %v188 = vpack.c.b16 %v174, %v173
    %v189 = vpack.c.b16 %v176, %v175
    %v190 = vpack.c.b16 %v178, %v177
    %v191 = vpack.c.b16 %v180, %v179
    %v192 = vpack.c.b16 %v182, %v181
    %v193 = vpack.c.b16 %v184, %v183
    %v194 = vpack.c.b16 %v186, %v185
    %203 = vmatprep.subr.bf16.mxu0 0
    %204 = vmatpush1.bf16.msra.mxu0 %v187
    %205 = vmatprep.subr.bf16.mxu0 0
    %206 = vmatpush1.bf16.msra.mxu0 %v188
    %207 = vmatprep.subr.bf16.mxu0 0
    %208 = vmatpush1.bf16.msra.mxu0 %v189
    %209 = vmatprep.subr.bf16.mxu0 0
    %210 = vmatpush1.bf16.msra.mxu0 %v190
    %211 = vmatprep.subr.bf16.mxu0 0
    %212 = vmatpush1.bf16.msra.mxu0 %v191
    %213 = vmatprep.subr.bf16.mxu0 0
    %214 = vmatpush1.bf16.msra.mxu0 %v192
    %215 = vmatprep.subr.bf16.mxu0 0
    %216 = vmatpush1.bf16.msra.mxu0 %v193
    %217 = vmatprep.subr.bf16.mxu0 0
    %218 = vmatpush1.bf16.msra.mxu0 %v194
    %219 = vmatprep.subr.bf16.mxu0 0
    %220 = vmatpush1.bf16.msra.mxu0 0
    %221 = vmatprep.subr.bf16.mxu0 0
    %222 = vmatpush1.bf16.msra.mxu0 0
    %223 = vmatprep.subr.bf16.mxu0 0
    %224 = vmatpush1.bf16.msra.mxu0 0
    %225 = vmatprep.subr.bf16.mxu0 0
    %226 = vmatpush1.bf16.msra.mxu0 0
    %227 = vmatprep.subr.bf16.mxu0 0
    %228 = vmatpush1.bf16.msra.mxu0 0
    %229 = vmatprep.subr.bf16.mxu0 0
    %230 = vmatpush1.bf16.msra.mxu0 0
    %231 = vmatprep.subr.bf16.mxu0 0
    %232 = vmatpush1.bf16.msra.mxu0 0
    %233 = vmatprep.subr.bf16.mxu0 0
    %234 = vmatpush1.bf16.msra.mxu0 0
    %235 = vmatprep.mubr.bf16.mxu0 0
    %236 = vmatmul.mubr.bf16.gmra.mrb[0].mxu0 %v131
    %v237 = vpop.f32.mrb[0].mxu0
    %v238 = vadd.f32 %v153, %v237
    %v239 = vpop.f32.mrb[0].mxu0
    %v240 = vpop.f32.mrb[0].mxu0
    %v241 = vpop.f32.mrb[0].mxu0
    %242 = vdwg.mxu0
    %v243 = vmax.f32 %v238, 0.0
    %v244 = vld [vmem:[%s5] sm:$0x1]
    %v245 = vld [vmem:[#allocation2] sm:$0x1]
    %247 = vset.pattern.permute.xlu0 0
    %248 = vperm.xlu0 %247, %v245
    %v249 = vpop.permute.xlu0 %248
    %v251 = vlaneseq
    %v252 = vshrl.u32 %v251, 7
    %v253 = vsub.s32 0, %v252
    %v254 = vrot.slane %v249, %v253
    %255 = vmatprep.subr.mxu0 0.0
    %256 = vmatpush1.xpose.msra.mxu0 %v243
    %257 = vmatprep.subr.mxu0 0.0
    %258 = vmatpush1.xpose.msra.mxu0 0.0
    %259 = vmatprep.subr.mxu0 0.0
    %260 = vmatpush1.xpose.msra.mxu0 0.0
    %261 = vmatprep.subr.mxu0 0.0
    %262 = vmatpush1.xpose.msra.mxu0 0.0
    %263 = vmatprep.subr.mxu0 0.0
    %264 = vmatpush1.xpose.msra.mxu0 0.0
    %265 = vmatprep.subr.mxu0 0.0
    %266 = vmatpush1.xpose.msra.mxu0 0.0
    %267 = vmatprep.subr.mxu0 0.0
    %268 = vmatpush1.xpose.msra.mxu0 0.0
    %269 = vmatprep.subr.mxu0 0.0
    %270 = vmatpush1.xpose.msra.mxu0 0.0
    %271 = vmatprep.subr.mxu0 0.0
    %272 = vmatpush1.xpose.msra.mxu0 0.0
    %273 = vmatprep.subr.mxu0 0.0
    %274 = vmatpush1.xpose.msra.mxu0 0.0
    %275 = vmatprep.subr.mxu0 0.0
    %276 = vmatpush1.xpose.msra.mxu0 0.0
    %277 = vmatprep.subr.mxu0 0.0
    %278 = vmatpush1.xpose.msra.mxu0 0.0
    %279 = vmatprep.subr.mxu0 0.0
    %280 = vmatpush1.xpose.msra.mxu0 0.0
    %281 = vmatprep.subr.mxu0 0.0
    %282 = vmatpush1.xpose.msra.mxu0 0.0
    %283 = vmatprep.subr.mxu0 0.0
    %284 = vmatpush1.xpose.msra.mxu0 0.0
    %285 = vmatprep.subr.mxu0 0.0
    %286 = vmatpush1.xpose.msra.mxu0 0.0
    %287 = vmatprep.subr.mxu0 0.0
    %288 = vmatpush1.xpose.msra.mxu0 0.0
    %289 = vmatprep.subr.mxu0 0.0
    %290 = vmatpush1.xpose.msra.mxu0 0.0
    %291 = vmatprep.subr.mxu0 0.0
    %292 = vmatpush1.xpose.msra.mxu0 0.0
    %293 = vmatprep.subr.mxu0 0.0
    %294 = vmatpush1.xpose.msra.mxu0 0.0
    %295 = vmatprep.subr.mxu0 0.0
    %296 = vmatpush1.xpose.msra.mxu0 0.0
    %297 = vmatprep.subr.mxu0 0.0
    %298 = vmatpush1.xpose.msra.mxu0 0.0
    %299 = vmatprep.subr.mxu0 0.0
    %300 = vmatpush1.xpose.msra.mxu0 0.0
    %301 = vmatprep.subr.mxu0 0.0
    %302 = vmatpush1.xpose.msra.mxu0 0.0
    %303 = vmatprep.subr.mxu0 0.0
    %304 = vmatpush1.xpose.msra.mxu0 0.0
    %305 = vmatprep.subr.mxu0 0.0
    %306 = vmatpush1.xpose.msra.mxu0 0.0
    %307 = vmatprep.subr.mxu0 0.0
    %308 = vmatpush1.xpose.msra.mxu0 0.0
    %309 = vmatprep.subr.mxu0 0.0
    %310 = vmatpush1.xpose.msra.mxu0 0.0
    %311 = vmatprep.subr.mxu0 0.0
    %312 = vmatpush1.xpose.msra.mxu0 0.0
    %313 = vmatprep.subr.mxu0 0.0
    %314 = vmatpush1.xpose.msra.mxu0 0.0
    %315 = vmatprep.subr.mxu0 0.0
    %316 = vmatpush1.xpose.msra.mxu0 0.0
    %317 = vmatprep.subr.mxu0 0.0
    %318 = vmatpush1.xpose.msra.mxu0 0.0
    %319 = vmatprep.mubr.f32.mxu0 0.0
    %320 = vmatmul.mubr.f32.gmra.mrb[0].mxu0 %v244
    %v321 = vpop.f32.mrb[0].mxu0
    %v322 = vadd.f32 %v254, %v321
    %v323 = vpop.f32.mrb[0].mxu0
    %324 = vdwg.mxu0
    %vm325 = vcmask 57344
    %326 = vst.msk [vmem:[#allocation9] sm:$0x1] %vm325, %v322
    // Predicated region
    $region42: #{tpu_custom_call.1} parent=1 // pred_check
      _
    $region43: #{tpu_custom_call.1} parent=1 // pred_check_branch
      %328 = sbr.rel (0) target = $region45
    $region44: #{tpu_custom_call.1} parent=1 // pred_region
      %s330 = ssub.s32 16, 16
      %331 = vsyncadd [#allocation5], %s330
      %s333 = sshll.u32 [#allocation9], 4
      %s334 = int_to_ptr.vmem [resolvable:$true] %s333
      %336 = dma.vmem_to_hbm [thread:$0]  %s334, 16, %s7, [#allocation5]
    $region45: #{tpu_custom_call.1} parent=1 // pred_fallthru
      _
    // Predicated region
    $region46: #{tpu_custom_call.1} parent=1 // pred_check
      _
    $region47: #{tpu_custom_call.1} parent=1 // pred_check_branch
      %338 = sbr.rel (0) target = $region49
    $region48: #{tpu_custom_call.1} parent=1 // pred_region
      %339 = dma.done [#allocation5], 16
    $region49: #{tpu_custom_call.1} parent=1 // pred_fallthru
      _
    %340 = vsyncpa [#allocation4], 1
    %341 = vsyncpa [#allocation7], 1
    %342 = vsyncpa [#allocation5], 1

</llo_original>
